<compile_context>
chip_gen: v6e
topology: v6e:2x2x1
jax: 0.10.0
libtpu: 0.0.40
codegen_flags: <defaults>
</compile_context>

<pallas_src>
import functools

import jax
import jax.numpy as jnp
from jax.experimental import pallas as pl
from jax.experimental.pallas import tpu as pltpu


def _downsample_conv_kernel(x_ref, w_ref, b_ref, o_ref, *, factor, Ho, Wo, Cin):
    """One batch image per grid step.

    x_ref: (Hr, factor, Wr, factor*Cin)  phase-decomposed, zero-padded NHWC image
    w_ref: (9, Cout, Cin)                tap-major weights, w_ref[kh*3+kw] = W[:, :, kh, kw]
    b_ref: (Cout, 1)                     bias (f32)
    o_ref: (Cout, Ho*Wo)                 NCHW-flat output block (lane-dense last dim)
    """
    M = Ho * Wo
    Cout = o_ref.shape[0]

    # Bias folded into the accumulator init (f32 accumulation throughout).
    acc = jnp.broadcast_to(b_ref[...].astype(jnp.float32), (Cout, M))

    # 9 shifted matmuls accumulated in registers: the im2col never touches HBM.
    for kh in range(3):
        ph, dh = kh % factor, kh // factor
        for kw in range(3):
            pw, dw = kw % factor, kw // factor
            # Static, unstrided slice thanks to the phase-decomposed layout:
            # tap[oh, ow, ci] = x_pad[factor*oh + kh, factor*ow + kw, ci]
            tap = x_ref[pl.ds(dh, Ho), ph, pl.ds(dw, Wo), pl.ds(pw * Cin, Cin)]
            tap = tap.reshape(M, Cin)          # layout-trivial when Wo % 8 == 0
            acc = acc + jax.lax.dot_general(
                w_ref[kh * 3 + kw], tap,        # (Cout,Cin) x (M,Cin)^T -> (Cout,M)
                dimension_numbers=(((1,), (1,)), ((), ())),
                preferred_element_type=jnp.float32,
            )

    o_ref[...] = acc.astype(o_ref.dtype)


def downsample2d(x_nchw, weight, bias, factor, *, compute_dtype=None):
    """Equivalent of nn.Conv2d(C, C, kernel_size=3, stride=factor, padding=1)(x).

    compute_dtype: optional MXU input dtype (e.g. jnp.bfloat16 on v6e/v7x);
    accumulation and bias stay f32 either way.
    """
    N, C, H, W = x_nchw.shape
    Cout, Cin, KH, KW = weight.shape
    assert (Cin, Cout, KH, KW) == (C, C, 3, 3)
    assert factor >= 1

    Ho = (H + 2 - 3) // factor + 1
    Wo = (W + 2 - 3) // factor + 1

    # Padded extents: multiple of `factor` (for the free phase reshape) and wide
    # enough for both the original image (left pad 1) and the last 3x3 window.
    def _padded(dim, dout):
        need = max(dim + 1, factor * (dout - 1) + 3)
        return -(-need // factor) * factor

    Hp, Wp = _padded(H, Ho), _padded(W, Wo)
    Hr, Wr = Hp // factor, Wp // factor

    dtype = compute_dtype if compute_dtype is not None else x_nchw.dtype

    # --- glue (single input pass): NCHW -> NHWC, zero pad, free phase reshape ---
    # TODO(synk): if the surrounding model keeps activations NHWC, this transpose
    # (the only remaining full HBM pass outside the kernel) disappears too.
    x = jnp.transpose(x_nchw, (0, 2, 3, 1)).astype(dtype)            # (N, H, W, C)
    xp = jnp.pad(x, ((0, 0), (1, Hp - H - 1), (1, Wp - W - 1), (0, 0)))
    xr = xp.reshape(N, Hr, factor, Wr, factor * C)                   # free re-view

    # Tap-major weights: w[kh*3+kw] = weight[:, :, kh, kw] -> (9, Cout, Cin)
    w = jnp.transpose(weight, (2, 3, 0, 1)).reshape(9, Cout, Cin).astype(dtype)
    b = bias.reshape(Cout, 1).astype(jnp.float32)

    out_elems = N * Cout * Ho * Wo
    flops = 2 * out_elems * 9 * Cin
    bytes_accessed = (xr.size * xr.dtype.itemsize + w.size * w.dtype.itemsize
                      + b.size * 4 + out_elems * x_nchw.dtype.itemsize)

    kernel = functools.partial(_downsample_conv_kernel,
                               factor=factor, Ho=Ho, Wo=Wo, Cin=Cin)

    out = pl.pallas_call(
        kernel,
        out_shape=jax.ShapeDtypeStruct((N, Cout, Ho * Wo), x_nchw.dtype),
        grid=(N,),
        in_specs=[
            pl.BlockSpec((None, Hr, factor, Wr, factor * C),
                         lambda n: (n, 0, 0, 0, 0)),
            pl.BlockSpec((9, Cout, Cin), lambda n: (0, 0, 0)),
            pl.BlockSpec((Cout, 1), lambda n: (0, 0)),
        ],
        out_specs=pl.BlockSpec((None, Cout, Ho * Wo), lambda n: (n, 0, 0)),
        compiler_params=pltpu.CompilerParams(
            dimension_semantics=("parallel",)),
        cost_estimate=pl.CostEstimate(flops=flops, transcendentals=0,
                                      bytes_accessed=bytes_accessed),
    )(xr, w, b)

    # Free reshape: (N, Cout, Ho*Wo) is already NCHW-flat; no output transpose.
    return out.reshape(N, Cout, Ho, Wo)


def _reference(x_nchw, weight, bias, factor):
    # Pure-JAX reference conv (for correctness check only).
    y = jax.lax.conv_general_dilated(
        x_nchw, weight,
        window_strides=(factor, factor),
        padding=((1, 1), (1, 1)),
        dimension_numbers=("NCHW", "OIHW", "NCHW"),
    )
    return y + bias.reshape(1, -1, 1, 1)


if __name__ == "__main__":
    key = jax.random.PRNGKey(0)
    kx, kw, kb = jax.random.split(key, 3)

    N, C, H, W = 2, 4, 16, 16
    factor = 2

    x = jax.random.normal(kx, (N, C, H, W), dtype=jnp.float32)
    # Deterministic synthetic Conv2d(C, C, 3, stride=factor, padding=1) params.
    weight = jax.random.normal(kw, (C, C, 3, 3), dtype=jnp.float32) * 0.1
    bias = jax.random.normal(kb, (C,), dtype=jnp.float32) * 0.1

    y = jax.block_until_ready(downsample2d(x, weight, bias, factor))

    y_ref = _reference(x, weight, bias, factor)
    assert y.shape == (N, C, H // factor, W // factor), y.shape
    assert jnp.allclose(y, y_ref, atol=1e-4, rtol=1e-4), \
        float(jnp.max(jnp.abs(y - y_ref)))

    print("KERNEL_OK")
</pallas_src>

<mosaic_0001>
module attributes {stable_mosaic.version = 11 : i64} {
  func.func @_downsample_conv_kernel(%arg0: i32, %arg1: memref<1x9x2x9x8xf32, #tpu.memory_space<vmem>>, %arg2: memref<9x4x4xf32, #tpu.memory_space<vmem>>, %arg3: memref<4x1xf32, #tpu.memory_space<vmem>>, %arg4: memref<1x4x64xf32, #tpu.memory_space<vmem>>) attributes {dimension_semantics = [#tpu.dimension_semantics<parallel>], iteration_bounds = array<i64: 2>, scalar_prefetch = 0 : i64, scratch_operands = 0 : i64, tpu.core_type = #tpu.core_type<tc>, window_params = [{transform_indices = @transform_0, window_bounds = array<i64: 1, 9, 2, 9, 8>}, {pipeline_mode = #tpu.pipeline_mode<synchronous>, transform_indices = @transform_1, window_bounds = array<i64: 9, 4, 4>}, {pipeline_mode = #tpu.pipeline_mode<synchronous>, transform_indices = @transform_2, window_bounds = array<i64: 4, 1>}, {transform_indices = @transform_3, window_bounds = array<i64: 1, 4, 64>}]} {
    %c0 = arith.constant 0 : index
    %c0_0 = arith.constant 0 : index
    %0 = vector.load %arg3[%c0, %c0_0] : memref<4x1xf32, #tpu.memory_space<vmem>>, vector<4x1xf32>
    %1 = vector.shape_cast %0 : vector<4x1xf32> to vector<4x1xf32>
    %2 = vector.broadcast %1 : vector<4x1xf32> to vector<4x64xf32>
    %c0_1 = arith.constant 0 : index
    %c0_2 = arith.constant 0 : index
    %c0_3 = arith.constant 0 : index
    %c0_4 = arith.constant 0 : index
    %c0_5 = arith.constant 0 : index
    %3 = vector.load %arg1[%c0_1, %c0_2, %c0_3, %c0_4, %c0_5] : memref<1x9x2x9x8xf32, #tpu.memory_space<vmem>>, vector<1x8x1x8x4xf32>
    %4 = vector.shape_cast %3 : vector<1x8x1x8x4xf32> to vector<8x8x4xf32>
    %5 = vector.shape_cast %4 : vector<8x8x4xf32> to vector<64x4xf32>
    %c0_6 = arith.constant 0 : index
    %c0_7 = arith.constant 0 : index
    %c0_8 = arith.constant 0 : index
    %6 = vector.load %arg2[%c0_6, %c0_7, %c0_8] : memref<9x4x4xf32, #tpu.memory_space<vmem>>, vector<1x4x4xf32>
    %7 = vector.shape_cast %6 : vector<1x4x4xf32> to vector<4x4xf32>
    %cst = arith.constant dense<0.000000e+00> : vector<4x64xf32>
    %8 = tpu.matmul %7, %5, %cst {dimension_numbers = #tpu.dot_dimension_numbers<[1], [1], [0], [0], [0, 0, 1, 0], [], []>} : vector<4x4xf32>, vector<64x4xf32>, vector<4x64xf32> -> vector<4x64xf32>
    %9 = arith.addf %2, %8 : vector<4x64xf32>
    %c0_9 = arith.constant 0 : index
    %c0_10 = arith.constant 0 : index
    %c0_11 = arith.constant 0 : index
    %c0_12 = arith.constant 0 : index
    %c4 = arith.constant 4 : index
    %10 = vector.load %arg1[%c0_9, %c0_10, %c0_11, %c0_12, %c4] : memref<1x9x2x9x8xf32, #tpu.memory_space<vmem>>, vector<1x8x1x8x4xf32>
    %11 = vector.shape_cast %10 : vector<1x8x1x8x4xf32> to vector<8x8x4xf32>
    %12 = vector.shape_cast %11 : vector<8x8x4xf32> to vector<64x4xf32>
    %c1 = arith.constant 1 : index
    %c0_13 = arith.constant 0 : index
    %c0_14 = arith.constant 0 : index
    %13 = vector.load %arg2[%c1, %c0_13, %c0_14] : memref<9x4x4xf32, #tpu.memory_space<vmem>>, vector<1x4x4xf32>
    %14 = vector.shape_cast %13 : vector<1x4x4xf32> to vector<4x4xf32>
    %cst_15 = arith.constant dense<0.000000e+00> : vector<4x64xf32>
    %15 = tpu.matmul %14, %12, %cst_15 {dimension_numbers = #tpu.dot_dimension_numbers<[1], [1], [0], [0], [0, 0, 1, 0], [], []>} : vector<4x4xf32>, vector<64x4xf32>, vector<4x64xf32> -> vector<4x64xf32>
    %16 = arith.addf %9, %15 : vector<4x64xf32>
    %c0_16 = arith.constant 0 : index
    %c0_17 = arith.constant 0 : index
    %c0_18 = arith.constant 0 : index
    %c1_19 = arith.constant 1 : index
    %c0_20 = arith.constant 0 : index
    %17 = vector.load %arg1[%c0_16, %c0_17, %c0_18, %c1_19, %c0_20] : memref<1x9x2x9x8xf32, #tpu.memory_space<vmem>>, vector<1x8x1x8x4xf32>
    %18 = vector.shape_cast %17 : vector<1x8x1x8x4xf32> to vector<8x8x4xf32>
    %19 = vector.shape_cast %18 : vector<8x8x4xf32> to vector<64x4xf32>
    %c2 = arith.constant 2 : index
    %c0_21 = arith.constant 0 : index
    %c0_22 = arith.constant 0 : index
    %20 = vector.load %arg2[%c2, %c0_21, %c0_22] : memref<9x4x4xf32, #tpu.memory_space<vmem>>, vector<1x4x4xf32>
    %21 = vector.shape_cast %20 : vector<1x4x4xf32> to vector<4x4xf32>
    %cst_23 = arith.constant dense<0.000000e+00> : vector<4x64xf32>
    %22 = tpu.matmul %21, %19, %cst_23 {dimension_numbers = #tpu.dot_dimension_numbers<[1], [1], [0], [0], [0, 0, 1, 0], [], []>} : vector<4x4xf32>, vector<64x4xf32>, vector<4x64xf32> -> vector<4x64xf32>
    %23 = arith.addf %16, %22 : vector<4x64xf32>
    %c0_24 = arith.constant 0 : index
    %c0_25 = arith.constant 0 : index
    %c1_26 = arith.constant 1 : index
    %c0_27 = arith.constant 0 : index
    %c0_28 = arith.constant 0 : index
    %24 = vector.load %arg1[%c0_24, %c0_25, %c1_26, %c0_27, %c0_28] : memref<1x9x2x9x8xf32, #tpu.memory_space<vmem>>, vector<1x8x1x8x4xf32>
    %25 = vector.shape_cast %24 : vector<1x8x1x8x4xf32> to vector<8x8x4xf32>
    %26 = vector.shape_cast %25 : vector<8x8x4xf32> to vector<64x4xf32>
    %c3 = arith.constant 3 : index
    %c0_29 = arith.constant 0 : index
    %c0_30 = arith.constant 0 : index
    %27 = vector.load %arg2[%c3, %c0_29, %c0_30] : memref<9x4x4xf32, #tpu.memory_space<vmem>>, vector<1x4x4xf32>
    %28 = vector.shape_cast %27 : vector<1x4x4xf32> to vector<4x4xf32>
    %cst_31 = arith.constant dense<0.000000e+00> : vector<4x64xf32>
    %29 = tpu.matmul %28, %26, %cst_31 {dimension_numbers = #tpu.dot_dimension_numbers<[1], [1], [0], [0], [0, 0, 1, 0], [], []>} : vector<4x4xf32>, vector<64x4xf32>, vector<4x64xf32> -> vector<4x64xf32>
    %30 = arith.addf %23, %29 : vector<4x64xf32>
    %c0_32 = arith.constant 0 : index
    %c0_33 = arith.constant 0 : index
    %c1_34 = arith.constant 1 : index
    %c0_35 = arith.constant 0 : index
    %c4_36 = arith.constant 4 : index
    %31 = vector.load %arg1[%c0_32, %c0_33, %c1_34, %c0_35, %c4_36] : memref<1x9x2x9x8xf32, #tpu.memory_space<vmem>>, vector<1x8x1x8x4xf32>
    %32 = vector.shape_cast %31 : vector<1x8x1x8x4xf32> to vector<8x8x4xf32>
    %33 = vector.shape_cast %32 : vector<8x8x4xf32> to vector<64x4xf32>
    %c4_37 = arith.constant 4 : index
    %c0_38 = arith.constant 0 : index
    %c0_39 = arith.constant 0 : index
    %34 = vector.load %arg2[%c4_37, %c0_38, %c0_39] : memref<9x4x4xf32, #tpu.memory_space<vmem>>, vector<1x4x4xf32>
    %35 = vector.shape_cast %34 : vector<1x4x4xf32> to vector<4x4xf32>
    %cst_40 = arith.constant dense<0.000000e+00> : vector<4x64xf32>
    %36 = tpu.matmul %35, %33, %cst_40 {dimension_numbers = #tpu.dot_dimension_numbers<[1], [1], [0], [0], [0, 0, 1, 0], [], []>} : vector<4x4xf32>, vector<64x4xf32>, vector<4x64xf32> -> vector<4x64xf32>
    %37 = arith.addf %30, %36 : vector<4x64xf32>
    %c0_41 = arith.constant 0 : index
    %c0_42 = arith.constant 0 : index
    %c1_43 = arith.constant 1 : index
    %c1_44 = arith.constant 1 : index
    %c0_45 = arith.constant 0 : index
    %38 = vector.load %arg1[%c0_41, %c0_42, %c1_43, %c1_44, %c0_45] : memref<1x9x2x9x8xf32, #tpu.memory_space<vmem>>, vector<1x8x1x8x4xf32>
    %39 = vector.shape_cast %38 : vector<1x8x1x8x4xf32> to vector<8x8x4xf32>
    %40 = vector.shape_cast %39 : vector<8x8x4xf32> to vector<64x4xf32>
    %c5 = arith.constant 5 : index
    %c0_46 = arith.constant 0 : index
    %c0_47 = arith.constant 0 : index
    %41 = vector.load %arg2[%c5, %c0_46, %c0_47] : memref<9x4x4xf32, #tpu.memory_space<vmem>>, vector<1x4x4xf32>
    %42 = vector.shape_cast %41 : vector<1x4x4xf32> to vector<4x4xf32>
    %cst_48 = arith.constant dense<0.000000e+00> : vector<4x64xf32>
    %43 = tpu.matmul %42, %40, %cst_48 {dimension_numbers = #tpu.dot_dimension_numbers<[1], [1], [0], [0], [0, 0, 1, 0], [], []>} : vector<4x4xf32>, vector<64x4xf32>, vector<4x64xf32> -> vector<4x64xf32>
    %44 = arith.addf %37, %43 : vector<4x64xf32>
    %c0_49 = arith.constant 0 : index
    %c1_50 = arith.constant 1 : index
    %c0_51 = arith.constant 0 : index
    %c0_52 = arith.constant 0 : index
    %c0_53 = arith.constant 0 : index
    %45 = vector.load %arg1[%c0_49, %c1_50, %c0_51, %c0_52, %c0_53] : memref<1x9x2x9x8xf32, #tpu.memory_space<vmem>>, vector<1x8x1x8x4xf32>
    %46 = vector.shape_cast %45 : vector<1x8x1x8x4xf32> to vector<8x8x4xf32>
    %47 = vector.shape_cast %46 : vector<8x8x4xf32> to vector<64x4xf32>
    %c6 = arith.constant 6 : index
    %c0_54 = arith.constant 0 : index
    %c0_55 = arith.constant 0 : index
    %48 = vector.load %arg2[%c6, %c0_54, %c0_55] : memref<9x4x4xf32, #tpu.memory_space<vmem>>, vector<1x4x4xf32>
    %49 = vector.shape_cast %48 : vector<1x4x4xf32> to vector<4x4xf32>
    %cst_56 = arith.constant dense<0.000000e+00> : vector<4x64xf32>
    %50 = tpu.matmul %49, %47, %cst_56 {dimension_numbers = #tpu.dot_dimension_numbers<[1], [1], [0], [0], [0, 0, 1, 0], [], []>} : vector<4x4xf32>, vector<64x4xf32>, vector<4x64xf32> -> vector<4x64xf32>
    %51 = arith.addf %44, %50 : vector<4x64xf32>
    %c0_57 = arith.constant 0 : index
    %c1_58 = arith.constant 1 : index
    %c0_59 = arith.constant 0 : index
    %c0_60 = arith.constant 0 : index
    %c4_61 = arith.constant 4 : index
    %52 = vector.load %arg1[%c0_57, %c1_58, %c0_59, %c0_60, %c4_61] : memref<1x9x2x9x8xf32, #tpu.memory_space<vmem>>, vector<1x8x1x8x4xf32>
    %53 = vector.shape_cast %52 : vector<1x8x1x8x4xf32> to vector<8x8x4xf32>
    %54 = vector.shape_cast %53 : vector<8x8x4xf32> to vector<64x4xf32>
    %c7 = arith.constant 7 : index
    %c0_62 = arith.constant 0 : index
    %c0_63 = arith.constant 0 : index
    %55 = vector.load %arg2[%c7, %c0_62, %c0_63] : memref<9x4x4xf32, #tpu.memory_space<vmem>>, vector<1x4x4xf32>
    %56 = vector.shape_cast %55 : vector<1x4x4xf32> to vector<4x4xf32>
    %cst_64 = arith.constant dense<0.000000e+00> : vector<4x64xf32>
    %57 = tpu.matmul %56, %54, %cst_64 {dimension_numbers = #tpu.dot_dimension_numbers<[1], [1], [0], [0], [0, 0, 1, 0], [], []>} : vector<4x4xf32>, vector<64x4xf32>, vector<4x64xf32> -> vector<4x64xf32>
    %58 = arith.addf %51, %57 : vector<4x64xf32>
    %c0_65 = arith.constant 0 : index
    %c1_66 = arith.constant 1 : index
    %c0_67 = arith.constant 0 : index
    %c1_68 = arith.constant 1 : index
    %c0_69 = arith.constant 0 : index
    %59 = vector.load %arg1[%c0_65, %c1_66, %c0_67, %c1_68, %c0_69] : memref<1x9x2x9x8xf32, #tpu.memory_space<vmem>>, vector<1x8x1x8x4xf32>
    %60 = vector.shape_cast %59 : vector<1x8x1x8x4xf32> to vector<8x8x4xf32>
    %61 = vector.shape_cast %60 : vector<8x8x4xf32> to vector<64x4xf32>
    %c8 = arith.constant 8 : index
    %c0_70 = arith.constant 0 : index
    %c0_71 = arith.constant 0 : index
    %62 = vector.load %arg2[%c8, %c0_70, %c0_71] : memref<9x4x4xf32, #tpu.memory_space<vmem>>, vector<1x4x4xf32>
    %63 = vector.shape_cast %62 : vector<1x4x4xf32> to vector<4x4xf32>
    %cst_72 = arith.constant dense<0.000000e+00> : vector<4x64xf32>
    %64 = tpu.matmul %63, %61, %cst_72 {dimension_numbers = #tpu.dot_dimension_numbers<[1], [1], [0], [0], [0, 0, 1, 0], [], []>} : vector<4x4xf32>, vector<64x4xf32>, vector<4x64xf32> -> vector<4x64xf32>
    %65 = arith.addf %58, %64 : vector<4x64xf32>
    %c0_73 = arith.constant 0 : index
    %c0_74 = arith.constant 0 : index
    %c0_75 = arith.constant 0 : index
    %66 = vector.load %arg4[%c0_73, %c0_74, %c0_75] : memref<1x4x64xf32, #tpu.memory_space<vmem>>, vector<1x4x64xf32>
    %67 = vector.shape_cast %66 : vector<1x4x64xf32> to vector<4x64xf32>
    %68 = vector.shape_cast %65 : vector<4x64xf32> to vector<1x4x64xf32>
    tpu.vector_store %arg4[%c0_73, %c0_74, %c0_75], %68 {strides = array<i32>} : memref<1x4x64xf32, #tpu.memory_space<vmem>>, vector<1x4x64xf32>,
    return
  }
  func.func @transform_0(%arg0: i32) -> (i32, i32, i32, i32, i32) {
    %c0_i32 = arith.constant 0 : i32
    %c0_i32_0 = arith.constant 0 : i32
    %c0_i32_1 = arith.constant 0 : i32
    %c0_i32_2 = arith.constant 0 : i32
    %c0_i32_3 = arith.constant 0 : i32
    return %arg0, %c0_i32, %c0_i32_0, %c0_i32_1, %c0_i32_2 : i32, i32, i32, i32, i32
  }
  func.func @transform_1(%arg0: i32) -> (i32, i32, i32) {
    %c0_i32 = arith.constant 0 : i32
    %c0_i32_0 = arith.constant 0 : i32
    %c0_i32_1 = arith.constant 0 : i32
    %c0_i32_2 = arith.constant 0 : i32
    return %c0_i32, %c0_i32_0, %c0_i32_1 : i32, i32, i32
  }
  func.func @transform_2(%arg0: i32) -> (i32, i32) {
    %c0_i32 = arith.constant 0 : i32
    %c0_i32_0 = arith.constant 0 : i32
    %c0_i32_1 = arith.constant 0 : i32
    return %c0_i32, %c0_i32_0 : i32, i32
  }
  func.func @transform_3(%arg0: i32) -> (i32, i32, i32) {
    %c0_i32 = arith.constant 0 : i32
    %c0_i32_0 = arith.constant 0 : i32
    %c0_i32_1 = arith.constant 0 : i32
    return %arg0, %c0_i32, %c0_i32_0 : i32, i32, i32
  }
}

</mosaic_0001>

<llo_original>
// kernel: tpu_custom_call.1
$region0: #{tpu_custom_call.1}
  #allocation0 [shape = 'u32[]', space=smem, size = 0x4, offset = 0x4, fixed_abs, tag = 'smem constant byte address 0x4 - core index']
  #allocation1 [shape = 'u32[144,128]{1,0:T(1,128)}', space=vmem, size = 0x12000, scoped, tag = 'internal scratch']
  %s0 = inlined_call_operand.vmem [shape: f32[2,9,2,9,8], index: 0, kind: input, shape index: {}]
  %s1 = inlined_call_operand.vmem [shape: f32[9,4,4], index: 1, kind: input, shape index: {}]
  %s2 = inlined_call_operand.vmem [shape: f32[4,1], index: 2, kind: input, shape index: {}]
  %s3 = inlined_call_operand.hbm [shape: f32[2,4,64], index: 3, kind: output, shape index: {}]
  %s4 = sld [smem:[#allocation0]]
  $region45: #{tpu_custom_call.1} parent=0
    _
  %s6 = ssub.s32 1, %s4
  %s7 = scalar_select 0, %s6, %s4
  $region1: #{tpu_custom_call.1} parent=0
    #allocation2 [shape = 'u8[4096]{0}', space=vmem, size = 0x1000, scoped, tag = 'output window, operand 0']
    #allocation3 [shape = 's32[2]{0}', space=sflag, size = 0x8, scoped, tag = 'scoped memory for tpu_custom_call.1']
    %8 = vsyncpa [#allocation3], 0
    %s9 = scalar_lea.sflag [#allocation3], 1
    %10 = vsyncpa %s9, 0
    loop: start=0, step=1, limit=4
    $region2: #{tpu_custom_call.1} parent=1 // loop_pre_header
      _
    $region3: #{tpu_custom_call.1} parent=1 // loop_header
      %s12 = sphi 0, %s16
      %p13 = scmp.ge.s32.totalorder %s12, 4
      %s22 = sphi 0, %s24
      %s25 = sphi 0, %s22
      %s26 = sphi 0, %s25
      %s42 = sphi 0, %s26
      %s46 = sphi 0, %s46
      %s48 = sphi 0, %s46
      %s49 = sphi 0, %s48
      %s63 = sphi 0, %s49
      %s67 = sphi 0, %s67
      %s69 = sphi 0, %s67
      %s70 = sphi 0, %s69
      %s84 = sphi 0, %s70
      %s90 = sphi 0, %s92
      %s93 = sphi 0, %s90
      %s94 = sphi 0, %s93
      %s110 = sphi 0, %s94
    $region4: #{tpu_custom_call.1} parent=1 // loop_header_branch
      %15 = sbr.rel (%p13) target = $region8
    $region5: #{tpu_custom_call.1} parent=1 // loop_body
      %s17 = ssub.s32 %s12, 1
      %s18 = ssub.s32 %s12, 2
      %s19 = sadd.s32 %s12, 1
      %s20 = ssub.s32 %s12, %s19
      %p21 = scmp.eq.s32.totalorder %s20, 0
      %s23 = sadd.s32 %s22, 1
      %s24 = scalar_select %p21, %s22, %s23
      %p27 = pneg %p21
      %p28 = scmp.eq.s32.totalorder %s12, 1
      %p29 = por %p27, %p28
      %p30 = scmp.ne.s32.totalorder %s22, %s25
      %p31 = scmp.eq.s32.totalorder %s12, 0
      %p32 = por %p30, %p31
      %p33 = scmp.ne.s32.totalorder %s22, %s25
      %p34 = scmp.eq.s32.totalorder %s17, 1
      %p35 = por %p33, %p34
      %p36 = scmp.ne.s32.totalorder %s25, %s26
      %p37 = scmp.eq.s32.totalorder %s17, 0
      %p38 = por %p36, %p37
      %p39 = scmp.ne.s32.totalorder %s25, %s26
      %p40 = scmp.eq.s32.totalorder %s18, 1
      %p41 = por %p39, %p40
      %p43 = scmp.ne.s32.totalorder %s26, %s42
      %p44 = scmp.eq.s32.totalorder %s18, 0
      %p45 = por %p43, %p44
      %s47 = sadd.s32 %s46, 1
      %p50 = scmp.eq.s32.totalorder %s12, 1
      %p51 = scmp.ne.s32.totalorder %s46, %s48
      %p52 = scmp.eq.s32.totalorder %s12, 0
      %p53 = por %p51, %p52
      %p54 = scmp.ne.s32.totalorder %s46, %s48
      %p55 = scmp.eq.s32.totalorder %s17, 1
      %p56 = por %p54, %p55
      %p57 = scmp.ne.s32.totalorder %s48, %s49
      %p58 = scmp.eq.s32.totalorder %s17, 0
      %p59 = por %p57, %p58
      %p60 = scmp.ne.s32.totalorder %s48, %s49
      %p61 = scmp.eq.s32.totalorder %s18, 1
      %p62 = por %p60, %p61
      %p64 = scmp.ne.s32.totalorder %s49, %s63
      %p65 = scmp.eq.s32.totalorder %s18, 0
      %p66 = por %p64, %p65
      %s68 = sadd.s32 %s67, 1
      %p71 = scmp.eq.s32.totalorder %s12, 1
      %p72 = scmp.ne.s32.totalorder %s67, %s69
      %p73 = scmp.eq.s32.totalorder %s12, 0
      %p74 = por %p72, %p73
      %p75 = scmp.ne.s32.totalorder %s67, %s69
      %p76 = scmp.eq.s32.totalorder %s17, 1
      %p77 = por %p75, %p76
      %p78 = scmp.ne.s32.totalorder %s69, %s70
      %p79 = scmp.eq.s32.totalorder %s17, 0
      %p80 = por %p78, %p79
      %p81 = scmp.ne.s32.totalorder %s69, %s70
      %p82 = scmp.eq.s32.totalorder %s18, 1
      %p83 = por %p81, %p82
      %p85 = scmp.ne.s32.totalorder %s70, %s84
      %p86 = scmp.eq.s32.totalorder %s18, 0
      %p87 = por %p85, %p86
      %s88 = ssub.s32 %s12, %s19
      %p89 = scmp.eq.s32.totalorder %s88, 0
      %s91 = sadd.s32 %s90, 1
      %s92 = scalar_select %p89, %s90, %s91
      %p95 = pneg %p89
      %p96 = scmp.eq.s32.totalorder %s12, 1
      %p97 = por %p95, %p96
      %p98 = scmp.ne.s32.totalorder %s90, %s93
      %p99 = scmp.eq.s32.totalorder %s12, 0
      %p100 = por %p98, %p99
      %p101 = scmp.ne.s32.totalorder %s90, %s93
      %p102 = scmp.eq.s32.totalorder %s17, 1
      %p103 = por %p101, %p102
      %p104 = scmp.ne.s32.totalorder %s93, %s94
      %p105 = scmp.eq.s32.totalorder %s17, 0
      %p106 = por %p104, %p105
      %p107 = scmp.ne.s32.totalorder %s93, %s94
      %p108 = scmp.eq.s32.totalorder %s18, 1
      %p109 = por %p107, %p108
      %p111 = scmp.ne.s32.totalorder %s94, %s110
      %p112 = scmp.eq.s32.totalorder %s18, 0
      %p113 = por %p111, %p112
      %p114 = scmp.le.s32.totalorder 1, %s12
      %p115 = scmp.lt.s32.totalorder %s12, 3
      %p116 = pnand %p114, %p115
      %p117 = pneg %p116
      // Predicated region
      $region9: #{tpu_custom_call.1} parent=5 // pred_check
        _
      $region10: #{tpu_custom_call.1} parent=5 // pred_check_branch
        %119 = sbr.rel (%p116) target = $region12
      $region11: #{tpu_custom_call.1} parent=5 // pred_region
        %s120 = ssub.s32 %s12, 1
        // Predicated region
        $region13: #{tpu_custom_call.1} parent=11 // pred_check
          %p121 = pneg %p59
        $region14: #{tpu_custom_call.1} parent=11 // pred_check_branch
          %123 = sbr.rel (%p121) target = $region16
        $region15: #{tpu_custom_call.1} parent=11 // pred_region
          _
        $region16: #{tpu_custom_call.1} parent=11 // pred_fallthru
          _
        // Predicated region
        $region17: #{tpu_custom_call.1} parent=11 // pred_check
          %p124 = pneg %p80
        $region18: #{tpu_custom_call.1} parent=11 // pred_check_branch
          %126 = sbr.rel (%p124) target = $region20
        $region19: #{tpu_custom_call.1} parent=11 // pred_region
          _
        $region20: #{tpu_custom_call.1} parent=11 // pred_fallthru
          _
      $region12: #{tpu_custom_call.1} parent=5 // pred_fallthru
        _
      %p127 = scmp.lt.s32.totalorder %s12, 2
      // Predicated region
      $region21: #{tpu_custom_call.1} parent=5 // pred_check
        %p128 = pneg %p127
      $region22: #{tpu_custom_call.1} parent=5 // pred_check_branch
        %130 = sbr.rel (%p128) target = $region24
      $region23: #{tpu_custom_call.1} parent=5 // pred_region
        // Predicated region
        $region25: #{tpu_custom_call.1} parent=23 // pred_check
          %p131 = pneg %p32
        $region26: #{tpu_custom_call.1} parent=23 // pred_check_branch
          %133 = sbr.rel (%p131) target = $region28
        $region27: #{tpu_custom_call.1} parent=23 // pred_region
          %p134 = scmp.lt.s32.totalorder %s12, 1
          %s135 = scalar_select %p134, %s12, 1
          %s136 = smul.addr %s135, 36
          %s137 = smul.addr %s136, 8
          %s138 = scalar_lea.vmem %s0, %s137
        $region28: #{tpu_custom_call.1} parent=23 // pred_fallthru
          _
      $region24: #{tpu_custom_call.1} parent=5 // pred_fallthru
        _
      %p139 = scmp.le.s32.totalorder 1, %s12
      %p140 = scmp.lt.s32.totalorder %s12, 3
      %p141 = pnand %p139, %p140
      %p142 = pneg %p141
      // Predicated region
      $region29: #{tpu_custom_call.1} parent=5 // pred_check
        _
      $region30: #{tpu_custom_call.1} parent=5 // pred_check_branch
        %144 = sbr.rel (%p141) target = $region32
      $region31: #{tpu_custom_call.1} parent=5 // pred_region
        %s145 = ssub.s32 %s12, 1
        %p146 = scmp.lt.s32.totalorder %s17, 1
        %s147 = scalar_select %p146, %s17, 1
        %s148 = smul.addr %s147, 36
        %s149 = smul.addr %s148, 8
        %s150 = scalar_lea.vmem %s0, %s149
        %p151 = pneg %p38
        %p152 = pneg %p35
        %p153 = pneg %p59
        %p154 = pneg %p56
        %p155 = pneg %p80
        %p156 = pneg %p77
        %p157 = pneg %p106
        %p158 = pneg %p103
        %s159 = sand.u32 %s93, 1
        %s160 = scalar_lea.sflag [#allocation3], %s159
        %s161 = sand.u32 %s93, 1
        %s162 = smul.addr %s161, 4
        %s163 = scalar_lea.vmem [#allocation2], %s162
        %p164 = scmp.lt.s32.totalorder %s17, 1
        %s165 = scalar_select %p164, %s17, 1
        %s166 = smul.addr %s165, 36
        %s167 = smul.addr %s166, 8
        %s168 = scalar_lea.vmem %s0, %s167
        %v169 = vld [vmem:[%s2] sm:$0xf]
        %171 = vset.pattern.permute.xlu0 0
        %172 = vperm.xlu0 %171, %v169
        %v173 = vpop.permute.xlu0 %172
        %v175 = vld [vmem:[%s168] sm:$0xff]
        %v176 = vld [vmem:[%s168 + $0x20] sm:$0xff]
        %v177 = vld [vmem:[%s168 + $0x40] sm:$0xff]
        %v178 = vld [vmem:[%s168 + $0x60] sm:$0xff]
        %v179 = vld [vmem:[%s168 + $0x80] sm:$0xff]
        %v180 = vld [vmem:[%s168 + $0xa0] sm:$0xff]
        %v181 = vld [vmem:[%s168 + $0xc0] sm:$0xff]
        %v182 = vld [vmem:[%s168 + $0xe0] sm:$0xff]
        %v183 = vld [vmem:[%s1] sm:$0xf]
        %vm184 = vcmask 31744
        %v186 = vsel %vm184, %v183, 0
        %v189 = vsel %vm184, %v175, 0
        %v192 = vsel %vm184, %v176, 0
        %v195 = vsel %vm184, %v177, 0
        %v198 = vsel %vm184, %v178, 0
        %v201 = vsel %vm184, %v179, 0
        %v204 = vsel %vm184, %v180, 0
        %v207 = vsel %vm184, %v181, 0
        %v210 = vsel %vm184, %v182, 0
        %212 = vmatprep.subr.mxu0 0.0
        %213 = vmatpush1.xpose.msra.mxu0 0.0
        %214 = vmatprep.subr.mxu0 0.0
        %215 = vmatpush1.xpose.msra.mxu0 0.0
        %216 = vmatprep.subr.mxu0 0.0
        %217 = vmatpush1.xpose.msra.mxu0 0.0
        %218 = vmatprep.subr.mxu0 0.0
        %219 = vmatpush1.xpose.msra.mxu0 0.0
        %220 = vmatprep.subr.mxu0 0.0
        %221 = vmatpush1.xpose.msra.mxu0 0.0
        %222 = vmatprep.subr.mxu0 0.0
        %223 = vmatpush1.xpose.msra.mxu0 0.0
        %224 = vmatprep.subr.mxu0 0.0
        %225 = vmatpush1.xpose.msra.mxu0 0.0
        %226 = vmatprep.subr.mxu0 0.0
        %227 = vmatpush1.xpose.msra.mxu0 0.0
        %228 = vmatprep.subr.mxu0 0.0
        %229 = vmatpush1.xpose.msra.mxu0 %v210
        %230 = vmatprep.subr.mxu0 0.0
        %231 = vmatpush1.xpose.msra.mxu0 %v207
        %232 = vmatprep.subr.mxu0 0.0
        %233 = vmatpush1.xpose.msra.mxu0 %v204
        %234 = vmatprep.subr.mxu0 0.0
        %235 = vmatpush1.xpose.msra.mxu0 %v201
        %236 = vmatprep.subr.mxu0 0.0
        %237 = vmatpush1.xpose.msra.mxu0 %v198
        %238 = vmatprep.subr.mxu0 0.0
        %239 = vmatpush1.xpose.msra.mxu0 %v195
        %240 = vmatprep.subr.mxu0 0.0
        %241 = vmatpush1.xpose.msra.mxu0 %v192
        %242 = vmatprep.subr.mxu0 0.0
        %243 = vmatpush1.xpose.msra.mxu0 %v189
        %244 = vmatprep.subr.mxu0 0.0
        %245 = vmatpush2.xpose.msra.mxu0 0.0
        %246 = vmatprep.subr.mxu0 0.0
        %247 = vmatpush2.xpose.msra.mxu0 0.0
        %248 = vmatprep.subr.mxu0 0.0
        %249 = vmatpush2.xpose.msra.mxu0 0.0
        %250 = vmatprep.subr.mxu0 0.0
        %251 = vmatpush2.xpose.msra.mxu0 0.0
        %252 = vmatprep.subr.mxu0 0.0
        %253 = vmatpush2.xpose.msra.mxu0 0.0
        %254 = vmatprep.subr.mxu0 0.0
        %255 = vmatpush2.xpose.msra.mxu0 0.0
        %256 = vmatprep.subr.mxu0 0.0
        %257 = vmatpush2.xpose.msra.mxu0 0.0
        %258 = vmatprep.subr.mxu0 0.0
        %259 = vmatpush2.xpose.msra.mxu0 0.0
        %260 = vmatprep.subr.mxu0 0.0
        %261 = vmatpush2.xpose.msra.mxu0 0.0
        %262 = vmatprep.subr.mxu0 0.0
        %263 = vmatpush2.xpose.msra.mxu0 0.0
        %264 = vmatprep.subr.mxu0 0.0
        %265 = vmatpush2.xpose.msra.mxu0 0.0
        %266 = vmatprep.subr.mxu0 0.0
        %267 = vmatpush2.xpose.msra.mxu0 0.0
        %268 = vmatprep.subr.mxu0 0.0
        %269 = vmatpush2.xpose.msra.mxu0 0.0
        %270 = vmatprep.subr.mxu0 0.0
        %271 = vmatpush2.xpose.msra.mxu0 0.0
        %272 = vmatprep.subr.mxu0 0.0
        %273 = vmatpush2.xpose.msra.mxu0 0.0
        %274 = vmatprep.subr.mxu0 0.0
        %275 = vmatpush2.xpose.msra.mxu0 0.0
        %276 = vmatprep.mubr.f32.mxu0 0.0
        %277 = vmatmul.mubr.f32.gmra.mxu0 %v186
        %v278 = vpop.f32.mrf.mxu0
        %v279 = vadd.f32 0.0, %v278
        %v280 = vpop.f32.mrf.mxu0
        %281 = vdwg.mxu0
        %v282 = vadd.f32 %v173, %v279
        %s283 = scalar_lea.vmem %s1, 4
        %v284 = vld [vmem:[%s283] sm:$0xf]
        %285 = vrot.lane.b32.xlu0 %v175, 124
        %v286 = vpop.permute.xlu0 %285
        %287 = vrot.lane.b32.xlu0 %v176, 124
        %v288 = vpop.permute.xlu0 %287
        %289 = vrot.lane.b32.xlu0 %v177, 124
        %v290 = vpop.permute.xlu0 %289
        %291 = vrot.lane.b32.xlu0 %v178, 124
        %v292 = vpop.permute.xlu0 %291
        %293 = vrot.lane.b32.xlu0 %v179, 124
        %v294 = vpop.permute.xlu0 %293
        %295 = vrot.lane.b32.xlu0 %v180, 124
        %v296 = vpop.permute.xlu0 %295
        %297 = vrot.lane.b32.xlu0 %v181, 124
        %v298 = vpop.permute.xlu0 %297
        %299 = vrot.lane.b32.xlu0 %v182, 124
        %v300 = vpop.permute.xlu0 %299
        %v302 = vsel %vm184, %v284, 0
        %v304 = vsel %vm184, %v286, 0
        %v306 = vsel %vm184, %v288, 0
        %v308 = vsel %vm184, %v290, 0
        %v310 = vsel %vm184, %v292, 0
        %v312 = vsel %vm184, %v294, 0
        %v314 = vsel %vm184, %v296, 0
        %v316 = vsel %vm184, %v298, 0
        %v318 = vsel %vm184, %v300, 0
        %320 = vmatprep.subr.mxu0 0.0
        %321 = vmatpush1.xpose.msra.mxu0 0.0
        %322 = vmatprep.subr.mxu0 0.0
        %323 = vmatpush1.xpose.msra.mxu0 0.0
        %324 = vmatprep.subr.mxu0 0.0
        %325 = vmatpush1.xpose.msra.mxu0 0.0
        %326 = vmatprep.subr.mxu0 0.0
        %327 = vmatpush1.xpose.msra.mxu0 0.0
        %328 = vmatprep.subr.mxu0 0.0
        %329 = vmatpush1.xpose.msra.mxu0 0.0
        %330 = vmatprep.subr.mxu0 0.0
        %331 = vmatpush1.xpose.msra.mxu0 0.0
        %332 = vmatprep.subr.mxu0 0.0
        %333 = vmatpush1.xpose.msra.mxu0 0.0
        %334 = vmatprep.subr.mxu0 0.0
        %335 = vmatpush1.xpose.msra.mxu0 0.0
        %336 = vmatprep.subr.mxu0 0.0
        %337 = vmatpush1.xpose.msra.mxu0 %v318
        %338 = vmatprep.subr.mxu0 0.0
        %339 = vmatpush1.xpose.msra.mxu0 %v316
        %340 = vmatprep.subr.mxu0 0.0
        %341 = vmatpush1.xpose.msra.mxu0 %v314
        %342 = vmatprep.subr.mxu0 0.0
        %343 = vmatpush1.xpose.msra.mxu0 %v312
        %344 = vmatprep.subr.mxu0 0.0
        %345 = vmatpush1.xpose.msra.mxu0 %v310
        %346 = vmatprep.subr.mxu0 0.0
        %347 = vmatpush1.xpose.msra.mxu0 %v308
        %348 = vmatprep.subr.mxu0 0.0
        %349 = vmatpush1.xpose.msra.mxu0 %v306
        %350 = vmatprep.subr.mxu0 0.0
        %351 = vmatpush1.xpose.msra.mxu0 %v304
        %352 = vmatprep.subr.mxu0 0.0
        %353 = vmatpush2.xpose.msra.mxu0 0.0
        %354 = vmatprep.subr.mxu0 0.0
        %355 = vmatpush2.xpose.msra.mxu0 0.0
        %356 = vmatprep.subr.mxu0 0.0
        %357 = vmatpush2.xpose.msra.mxu0 0.0
        %358 = vmatprep.subr.mxu0 0.0
        %359 = vmatpush2.xpose.msra.mxu0 0.0
        %360 = vmatprep.subr.mxu0 0.0
        %361 = vmatpush2.xpose.msra.mxu0 0.0
        %362 = vmatprep.subr.mxu0 0.0
        %363 = vmatpush2.xpose.msra.mxu0 0.0
        %364 = vmatprep.subr.mxu0 0.0
        %365 = vmatpush2.xpose.msra.mxu0 0.0
        %366 = vmatprep.subr.mxu0 0.0
        %367 = vmatpush2.xpose.msra.mxu0 0.0
        %368 = vmatprep.subr.mxu0 0.0
        %369 = vmatpush2.xpose.msra.mxu0 0.0
        %370 = vmatprep.subr.mxu0 0.0
        %371 = vmatpush2.xpose.msra.mxu0 0.0
        %372 = vmatprep.subr.mxu0 0.0
        %373 = vmatpush2.xpose.msra.mxu0 0.0
        %374 = vmatprep.subr.mxu0 0.0
        %375 = vmatpush2.xpose.msra.mxu0 0.0
        %376 = vmatprep.subr.mxu0 0.0
        %377 = vmatpush2.xpose.msra.mxu0 0.0
        %378 = vmatprep.subr.mxu0 0.0
        %379 = vmatpush2.xpose.msra.mxu0 0.0
        %380 = vmatprep.subr.mxu0 0.0
        %381 = vmatpush2.xpose.msra.mxu0 0.0
        %382 = vmatprep.subr.mxu0 0.0
        %383 = vmatpush2.xpose.msra.mxu0 0.0
        %384 = vmatprep.mubr.f32.mxu0 0.0
        %385 = vmatmul.mubr.f32.gmra.mxu0 %v302
        %v386 = vpop.f32.mrf.mxu0
        %v387 = vadd.f32 0.0, %v386
        %v388 = vpop.f32.mrf.mxu0
        %389 = vdwg.mxu0
        %v390 = vadd.f32 %v282, %v387
        %v391 = vld [vmem:[%s168 + $0x1] sm:$0xff]
        %v392 = vld [vmem:[%s168 + $0x21] sm:$0xff]
        %v393 = vld [vmem:[%s168 + $0x41] sm:$0xff]
        %v394 = vld [vmem:[%s168 + $0x61] sm:$0xff]
        %v395 = vld [vmem:[%s168 + $0x81] sm:$0xff]
        %v396 = vld [vmem:[%s168 + $0xa1] sm:$0xff]
        %v397 = vld [vmem:[%s168 + $0xc1] sm:$0xff]
        %v398 = vld [vmem:[%s168 + $0xe1] sm:$0xff]
        %s399 = scalar_lea.vmem %s1, 8
        %v400 = vld [vmem:[%s399] sm:$0xf]
        %v402 = vsel %vm184, %v400, 0
        %v405 = vsel %vm184, %v391, 0
        %v408 = vsel %vm184, %v392, 0
        %v411 = vsel %vm184, %v393, 0
        %v414 = vsel %vm184, %v394, 0
        %v417 = vsel %vm184, %v395, 0
        %v420 = vsel %vm184, %v396, 0
        %v423 = vsel %vm184, %v397, 0
        %v426 = vsel %vm184, %v398, 0
        %428 = vmatprep.subr.mxu0 0.0
        %429 = vmatpush1.xpose.msra.mxu0 0.0
        %430 = vmatprep.subr.mxu0 0.0
        %431 = vmatpush1.xpose.msra.mxu0 0.0
        %432 = vmatprep.subr.mxu0 0.0
        %433 = vmatpush1.xpose.msra.mxu0 0.0
        %434 = vmatprep.subr.mxu0 0.0
        %435 = vmatpush1.xpose.msra.mxu0 0.0
        %436 = vmatprep.subr.mxu0 0.0
        %437 = vmatpush1.xpose.msra.mxu0 0.0
        %438 = vmatprep.subr.mxu0 0.0
        %439 = vmatpush1.xpose.msra.mxu0 0.0
        %440 = vmatprep.subr.mxu0 0.0
        %441 = vmatpush1.xpose.msra.mxu0 0.0
        %442 = vmatprep.subr.mxu0 0.0
        %443 = vmatpush1.xpose.msra.mxu0 0.0
        %444 = vmatprep.subr.mxu0 0.0
        %445 = vmatpush1.xpose.msra.mxu0 %v426
        %446 = vmatprep.subr.mxu0 0.0
        %447 = vmatpush1.xpose.msra.mxu0 %v423
        %448 = vmatprep.subr.mxu0 0.0
        %449 = vmatpush1.xpose.msra.mxu0 %v420
        %450 = vmatprep.subr.mxu0 0.0
        %451 = vmatpush1.xpose.msra.mxu0 %v417
        %452 = vmatprep.subr.mxu0 0.0
        %453 = vmatpush1.xpose.msra.mxu0 %v414
        %454 = vmatprep.subr.mxu0 0.0
        %455 = vmatpush1.xpose.msra.mxu0 %v411
        %456 = vmatprep.subr.mxu0 0.0
        %457 = vmatpush1.xpose.msra.mxu0 %v408
        %458 = vmatprep.subr.mxu0 0.0
        %459 = vmatpush1.xpose.msra.mxu0 %v405
        %460 = vmatprep.subr.mxu0 0.0
        %461 = vmatpush2.xpose.msra.mxu0 0.0
        %462 = vmatprep.subr.mxu0 0.0
        %463 = vmatpush2.xpose.msra.mxu0 0.0
        %464 = vmatprep.subr.mxu0 0.0
        %465 = vmatpush2.xpose.msra.mxu0 0.0
        %466 = vmatprep.subr.mxu0 0.0
        %467 = vmatpush2.xpose.msra.mxu0 0.0
        %468 = vmatprep.subr.mxu0 0.0
        %469 = vmatpush2.xpose.msra.mxu0 0.0
        %470 = vmatprep.subr.mxu0 0.0
        %471 = vmatpush2.xpose.msra.mxu0 0.0
        %472 = vmatprep.subr.mxu0 0.0
        %473 = vmatpush2.xpose.msra.mxu0 0.0
        %474 = vmatprep.subr.mxu0 0.0
        %475 = vmatpush2.xpose.msra.mxu0 0.0
        %476 = vmatprep.subr.mxu0 0.0
        %477 = vmatpush2.xpose.msra.mxu0 0.0
        %478 = vmatprep.subr.mxu0 0.0
        %479 = vmatpush2.xpose.msra.mxu0 0.0
        %480 = vmatprep.subr.mxu0 0.0
        %481 = vmatpush2.xpose.msra.mxu0 0.0
        %482 = vmatprep.subr.mxu0 0.0
        %483 = vmatpush2.xpose.msra.mxu0 0.0
        %484 = vmatprep.subr.mxu0 0.0
        %485 = vmatpush2.xpose.msra.mxu0 0.0
        %486 = vmatprep.subr.mxu0 0.0
        %487 = vmatpush2.xpose.msra.mxu0 0.0
        %488 = vmatprep.subr.mxu0 0.0
        %489 = vmatpush2.xpose.msra.mxu0 0.0
        %490 = vmatprep.subr.mxu0 0.0
        %491 = vmatpush2.xpose.msra.mxu0 0.0
        %492 = vmatprep.mubr.f32.mxu0 0.0
        %493 = vmatmul.mubr.f32.gmra.mxu0 %v402
        %v494 = vpop.f32.mrf.mxu0
        %v495 = vadd.f32 0.0, %v494
        %v496 = vpop.f32.mrf.mxu0
        %497 = vdwg.mxu0
        %v498 = vadd.f32 %v390, %v495
        %s499 = scalar_lea.vmem %s168, 16
        %v500 = vld [vmem:[%s499] sm:$0xff]
        %v501 = vld [vmem:[%s499 + $0x20] sm:$0xff]
        %v502 = vld [vmem:[%s499 + $0x40] sm:$0xff]
        %v503 = vld [vmem:[%s499 + $0x60] sm:$0xff]
        %v504 = vld [vmem:[%s499 + $0x80] sm:$0xff]
        %v505 = vld [vmem:[%s499 + $0xa0] sm:$0xff]
        %v506 = vld [vmem:[%s499 + $0xc0] sm:$0xff]
        %v507 = vld [vmem:[%s499 + $0xe0] sm:$0xff]
        %s508 = scalar_lea.vmem %s1, 12
        %v509 = vld [vmem:[%s508] sm:$0xf]
        %v511 = vsel %vm184, %v509, 0
        %v514 = vsel %vm184, %v500, 0
        %v517 = vsel %vm184, %v501, 0
        %v520 = vsel %vm184, %v502, 0
        %v523 = vsel %vm184, %v503, 0
        %v526 = vsel %vm184, %v504, 0
        %v529 = vsel %vm184, %v505, 0
        %v532 = vsel %vm184, %v506, 0
        %v535 = vsel %vm184, %v507, 0
        %537 = vmatprep.subr.mxu0 0.0
        %538 = vmatpush1.xpose.msra.mxu0 0.0
        %539 = vmatprep.subr.mxu0 0.0
        %540 = vmatpush1.xpose.msra.mxu0 0.0
        %541 = vmatprep.subr.mxu0 0.0
        %542 = vmatpush1.xpose.msra.mxu0 0.0
        %543 = vmatprep.subr.mxu0 0.0
        %544 = vmatpush1.xpose.msra.mxu0 0.0
        %545 = vmatprep.subr.mxu0 0.0
        %546 = vmatpush1.xpose.msra.mxu0 0.0
        %547 = vmatprep.subr.mxu0 0.0
        %548 = vmatpush1.xpose.msra.mxu0 0.0
        %549 = vmatprep.subr.mxu0 0.0
        %550 = vmatpush1.xpose.msra.mxu0 0.0
        %551 = vmatprep.subr.mxu0 0.0
        %552 = vmatpush1.xpose.msra.mxu0 0.0
        %553 = vmatprep.subr.mxu0 0.0
        %554 = vmatpush1.xpose.msra.mxu0 %v535
        %555 = vmatprep.subr.mxu0 0.0
        %556 = vmatpush1.xpose.msra.mxu0 %v532
        %557 = vmatprep.subr.mxu0 0.0
        %558 = vmatpush1.xpose.msra.mxu0 %v529
        %559 = vmatprep.subr.mxu0 0.0
        %560 = vmatpush1.xpose.msra.mxu0 %v526
        %561 = vmatprep.subr.mxu0 0.0
        %562 = vmatpush1.xpose.msra.mxu0 %v523
        %563 = vmatprep.subr.mxu0 0.0
        %564 = vmatpush1.xpose.msra.mxu0 %v520
        %565 = vmatprep.subr.mxu0 0.0
        %566 = vmatpush1.xpose.msra.mxu0 %v517
        %567 = vmatprep.subr.mxu0 0.0
        %568 = vmatpush1.xpose.msra.mxu0 %v514
        %569 = vmatprep.subr.mxu0 0.0
        %570 = vmatpush2.xpose.msra.mxu0 0.0
        %571 = vmatprep.subr.mxu0 0.0
        %572 = vmatpush2.xpose.msra.mxu0 0.0
        %573 = vmatprep.subr.mxu0 0.0
        %574 = vmatpush2.xpose.msra.mxu0 0.0
        %575 = vmatprep.subr.mxu0 0.0
        %576 = vmatpush2.xpose.msra.mxu0 0.0
        %577 = vmatprep.subr.mxu0 0.0
        %578 = vmatpush2.xpose.msra.mxu0 0.0
        %579 = vmatprep.subr.mxu0 0.0
        %580 = vmatpush2.xpose.msra.mxu0 0.0
        %581 = vmatprep.subr.mxu0 0.0
        %582 = vmatpush2.xpose.msra.mxu0 0.0
        %583 = vmatprep.subr.mxu0 0.0
        %584 = vmatpush2.xpose.msra.mxu0 0.0
        %585 = vmatprep.subr.mxu0 0.0
        %586 = vmatpush2.xpose.msra.mxu0 0.0
        %587 = vmatprep.subr.mxu0 0.0
        %588 = vmatpush2.xpose.msra.mxu0 0.0
        %589 = vmatprep.subr.mxu0 0.0
        %590 = vmatpush2.xpose.msra.mxu0 0.0
        %591 = vmatprep.subr.mxu0 0.0
        %592 = vmatpush2.xpose.msra.mxu0 0.0
        %593 = vmatprep.subr.mxu0 0.0
        %594 = vmatpush2.xpose.msra.mxu0 0.0
        %595 = vmatprep.subr.mxu0 0.0
        %596 = vmatpush2.xpose.msra.mxu0 0.0
        %597 = vmatprep.subr.mxu0 0.0
        %598 = vmatpush2.xpose.msra.mxu0 0.0
        %599 = vmatprep.subr.mxu0 0.0
        %600 = vmatpush2.xpose.msra.mxu0 0.0
        %601 = vmatprep.mubr.f32.mxu0 0.0
        %602 = vmatmul.mubr.f32.gmra.mxu0 %v511
        %v603 = vpop.f32.mrf.mxu0
        %v604 = vadd.f32 0.0, %v603
        %v605 = vpop.f32.mrf.mxu0
        %606 = vdwg.mxu0
        %v607 = vadd.f32 %v498, %v604
        %s608 = scalar_lea.vmem %s1, 16
        %v609 = vld [vmem:[%s608] sm:$0xf]
        %610 = vrot.lane.b32.xlu0 %v500, 124
        %v611 = vpop.permute.xlu0 %610
        %612 = vrot.lane.b32.xlu0 %v501, 124
        %v613 = vpop.permute.xlu0 %612
        %614 = vrot.lane.b32.xlu0 %v502, 124
        %v615 = vpop.permute.xlu0 %614
        %616 = vrot.lane.b32.xlu0 %v503, 124
        %v617 = vpop.permute.xlu0 %616
        %618 = vrot.lane.b32.xlu0 %v504, 124
        %v619 = vpop.permute.xlu0 %618
        %620 = vrot.lane.b32.xlu0 %v505, 124
        %v621 = vpop.permute.xlu0 %620
        %622 = vrot.lane.b32.xlu0 %v506, 124
        %v623 = vpop.permute.xlu0 %622
        %624 = vrot.lane.b32.xlu0 %v507, 124
        %v625 = vpop.permute.xlu0 %624
        %v627 = vsel %vm184, %v609, 0
        %v629 = vsel %vm184, %v611, 0
        %v631 = vsel %vm184, %v613, 0
        %v633 = vsel %vm184, %v615, 0
        %v635 = vsel %vm184, %v617, 0
        %v637 = vsel %vm184, %v619, 0
        %v639 = vsel %vm184, %v621, 0
        %v641 = vsel %vm184, %v623, 0
        %v643 = vsel %vm184, %v625, 0
        %645 = vmatprep.subr.mxu0 0.0
        %646 = vmatpush1.xpose.msra.mxu0 0.0
        %647 = vmatprep.subr.mxu0 0.0
        %648 = vmatpush1.xpose.msra.mxu0 0.0
        %649 = vmatprep.subr.mxu0 0.0
        %650 = vmatpush1.xpose.msra.mxu0 0.0
        %651 = vmatprep.subr.mxu0 0.0
        %652 = vmatpush1.xpose.msra.mxu0 0.0
        %653 = vmatprep.subr.mxu0 0.0
        %654 = vmatpush1.xpose.msra.mxu0 0.0
        %655 = vmatprep.subr.mxu0 0.0
        %656 = vmatpush1.xpose.msra.mxu0 0.0
        %657 = vmatprep.subr.mxu0 0.0
        %658 = vmatpush1.xpose.msra.mxu0 0.0
        %659 = vmatprep.subr.mxu0 0.0
        %660 = vmatpush1.xpose.msra.mxu0 0.0
        %661 = vmatprep.subr.mxu0 0.0
        %662 = vmatpush1.xpose.msra.mxu0 %v643
        %663 = vmatprep.subr.mxu0 0.0
        %664 = vmatpush1.xpose.msra.mxu0 %v641
        %665 = vmatprep.subr.mxu0 0.0
        %666 = vmatpush1.xpose.msra.mxu0 %v639
        %667 = vmatprep.subr.mxu0 0.0
        %668 = vmatpush1.xpose.msra.mxu0 %v637
        %669 = vmatprep.subr.mxu0 0.0
        %670 = vmatpush1.xpose.msra.mxu0 %v635
        %671 = vmatprep.subr.mxu0 0.0
        %672 = vmatpush1.xpose.msra.mxu0 %v633
        %673 = vmatprep.subr.mxu0 0.0
        %674 = vmatpush1.xpose.msra.mxu0 %v631
        %675 = vmatprep.subr.mxu0 0.0
        %676 = vmatpush1.xpose.msra.mxu0 %v629
        %677 = vmatprep.subr.mxu0 0.0
        %678 = vmatpush2.xpose.msra.mxu0 0.0
        %679 = vmatprep.subr.mxu0 0.0
        %680 = vmatpush2.xpose.msra.mxu0 0.0
        %681 = vmatprep.subr.mxu0 0.0
        %682 = vmatpush2.xpose.msra.mxu0 0.0
        %683 = vmatprep.subr.mxu0 0.0
        %684 = vmatpush2.xpose.msra.mxu0 0.0
        %685 = vmatprep.subr.mxu0 0.0
        %686 = vmatpush2.xpose.msra.mxu0 0.0
        %687 = vmatprep.subr.mxu0 0.0
        %688 = vmatpush2.xpose.msra.mxu0 0.0
        %689 = vmatprep.subr.mxu0 0.0
        %690 = vmatpush2.xpose.msra.mxu0 0.0
        %691 = vmatprep.subr.mxu0 0.0
        %692 = vmatpush2.xpose.msra.mxu0 0.0
        %693 = vmatprep.subr.mxu0 0.0
        %694 = vmatpush2.xpose.msra.mxu0 0.0
        %695 = vmatprep.subr.mxu0 0.0
        %696 = vmatpush2.xpose.msra.mxu0 0.0
        %697 = vmatprep.subr.mxu0 0.0
        %698 = vmatpush2.xpose.msra.mxu0 0.0
        %699 = vmatprep.subr.mxu0 0.0
        %700 = vmatpush2.xpose.msra.mxu0 0.0
        %701 = vmatprep.subr.mxu0 0.0
        %702 = vmatpush2.xpose.msra.mxu0 0.0
        %703 = vmatprep.subr.mxu0 0.0
        %704 = vmatpush2.xpose.msra.mxu0 0.0
        %705 = vmatprep.subr.mxu0 0.0
        %706 = vmatpush2.xpose.msra.mxu0 0.0
        %707 = vmatprep.subr.mxu0 0.0
        %708 = vmatpush2.xpose.msra.mxu0 0.0
        %709 = vmatprep.mubr.f32.mxu0 0.0
        %710 = vmatmul.mubr.f32.gmra.mxu0 %v627
        %v711 = vpop.f32.mrf.mxu0
        %v712 = vadd.f32 0.0, %v711
        %v713 = vpop.f32.mrf.mxu0
        %714 = vdwg.mxu0
        %v715 = vadd.f32 %v607, %v712
        %v716 = vld [vmem:[%s499 + $0x1] sm:$0xff]
        %v717 = vld [vmem:[%s499 + $0x21] sm:$0xff]
        %v718 = vld [vmem:[%s499 + $0x41] sm:$0xff]
        %v719 = vld [vmem:[%s499 + $0x61] sm:$0xff]
        %v720 = vld [vmem:[%s499 + $0x81] sm:$0xff]
        %v721 = vld [vmem:[%s499 + $0xa1] sm:$0xff]
        %v722 = vld [vmem:[%s499 + $0xc1] sm:$0xff]
        %v723 = vld [vmem:[%s499 + $0xe1] sm:$0xff]
        %s724 = scalar_lea.vmem %s1, 20
        %v725 = vld [vmem:[%s724] sm:$0xf]
        %v727 = vsel %vm184, %v725, 0
        %v730 = vsel %vm184, %v716, 0
        %v733 = vsel %vm184, %v717, 0
        %v736 = vsel %vm184, %v718, 0
        %v739 = vsel %vm184, %v719, 0
        %v742 = vsel %vm184, %v720, 0
        %v745 = vsel %vm184, %v721, 0
        %v748 = vsel %vm184, %v722, 0
        %v751 = vsel %vm184, %v723, 0
        %753 = vmatprep.subr.mxu0 0.0
        %754 = vmatpush1.xpose.msra.mxu0 0.0
        %755 = vmatprep.subr.mxu0 0.0
        %756 = vmatpush1.xpose.msra.mxu0 0.0
        %757 = vmatprep.subr.mxu0 0.0
        %758 = vmatpush1.xpose.msra.mxu0 0.0
        %759 = vmatprep.subr.mxu0 0.0
        %760 = vmatpush1.xpose.msra.mxu0 0.0
        %761 = vmatprep.subr.mxu0 0.0
        %762 = vmatpush1.xpose.msra.mxu0 0.0
        %763 = vmatprep.subr.mxu0 0.0
        %764 = vmatpush1.xpose.msra.mxu0 0.0
        %765 = vmatprep.subr.mxu0 0.0
        %766 = vmatpush1.xpose.msra.mxu0 0.0
        %767 = vmatprep.subr.mxu0 0.0
        %768 = vmatpush1.xpose.msra.mxu0 0.0
        %769 = vmatprep.subr.mxu0 0.0
        %770 = vmatpush1.xpose.msra.mxu0 %v751
        %771 = vmatprep.subr.mxu0 0.0
        %772 = vmatpush1.xpose.msra.mxu0 %v748
        %773 = vmatprep.subr.mxu0 0.0
        %774 = vmatpush1.xpose.msra.mxu0 %v745
        %775 = vmatprep.subr.mxu0 0.0
        %776 = vmatpush1.xpose.msra.mxu0 %v742
        %777 = vmatprep.subr.mxu0 0.0
        %778 = vmatpush1.xpose.msra.mxu0 %v739
        %779 = vmatprep.subr.mxu0 0.0
        %780 = vmatpush1.xpose.msra.mxu0 %v736
        %781 = vmatprep.subr.mxu0 0.0
        %782 = vmatpush1.xpose.msra.mxu0 %v733
        %783 = vmatprep.subr.mxu0 0.0
        %784 = vmatpush1.xpose.msra.mxu0 %v730
        %785 = vmatprep.subr.mxu0 0.0
        %786 = vmatpush2.xpose.msra.mxu0 0.0
        %787 = vmatprep.subr.mxu0 0.0
        %788 = vmatpush2.xpose.msra.mxu0 0.0
        %789 = vmatprep.subr.mxu0 0.0
        %790 = vmatpush2.xpose.msra.mxu0 0.0
        %791 = vmatprep.subr.mxu0 0.0
        %792 = vmatpush2.xpose.msra.mxu0 0.0
        %793 = vmatprep.subr.mxu0 0.0
        %794 = vmatpush2.xpose.msra.mxu0 0.0
        %795 = vmatprep.subr.mxu0 0.0
        %796 = vmatpush2.xpose.msra.mxu0 0.0
        %797 = vmatprep.subr.mxu0 0.0
        %798 = vmatpush2.xpose.msra.mxu0 0.0
        %799 = vmatprep.subr.mxu0 0.0
        %800 = vmatpush2.xpose.msra.mxu0 0.0
        %801 = vmatprep.subr.mxu0 0.0
        %802 = vmatpush2.xpose.msra.mxu0 0.0
        %803 = vmatprep.subr.mxu0 0.0
        %804 = vmatpush2.xpose.msra.mxu0 0.0
        %805 = vmatprep.subr.mxu0 0.0
        %806 = vmatpush2.xpose.msra.mxu0 0.0
        %807 = vmatprep.subr.mxu0 0.0
        %808 = vmatpush2.xpose.msra.mxu0 0.0
        %809 = vmatprep.subr.mxu0 0.0
        %810 = vmatpush2.xpose.msra.mxu0 0.0
        %811 = vmatprep.subr.mxu0 0.0
        %812 = vmatpush2.xpose.msra.mxu0 0.0
        %813 = vmatprep.subr.mxu0 0.0
        %814 = vmatpush2.xpose.msra.mxu0 0.0
        %815 = vmatprep.subr.mxu0 0.0
        %816 = vmatpush2.xpose.msra.mxu0 0.0
        %817 = vmatprep.mubr.f32.mxu0 0.0
        %818 = vmatmul.mubr.f32.gmra.mxu0 %v727
        %v819 = vpop.f32.mrf.mxu0
        %v820 = vadd.f32 0.0, %v819
        %v821 = vpop.f32.mrf.mxu0
        %822 = vdwg.mxu0
        %v823 = vadd.f32 %v715, %v820
        %s824 = scalar_lea.vmem %s168, 32
        %v825 = vld [vmem:[%s824] sm:$0xff]
        %v826 = vld [vmem:[%s824 + $0x20] sm:$0xff]
        %v827 = vld [vmem:[%s824 + $0x40] sm:$0xff]
        %v828 = vld [vmem:[%s824 + $0x60] sm:$0xff]
        %v829 = vld [vmem:[%s824 + $0x80] sm:$0xff]
        %v830 = vld [vmem:[%s824 + $0xa0] sm:$0xff]
        %v831 = vld [vmem:[%s824 + $0xc0] sm:$0xff]
        %v832 = vld [vmem:[%s824 + $0xe0] sm:$0xff]
        %s833 = scalar_lea.vmem %s1, 24
        %v834 = vld [vmem:[%s833] sm:$0xf]
        %v836 = vsel %vm184, %v834, 0
        %v839 = vsel %vm184, %v825, 0
        %v842 = vsel %vm184, %v826, 0
        %v845 = vsel %vm184, %v827, 0
        %v848 = vsel %vm184, %v828, 0
        %v851 = vsel %vm184, %v829, 0
        %v854 = vsel %vm184, %v830, 0
        %v857 = vsel %vm184, %v831, 0
        %v860 = vsel %vm184, %v832, 0
        %862 = vmatprep.subr.mxu0 0.0
        %863 = vmatpush1.xpose.msra.mxu0 0.0
        %864 = vmatprep.subr.mxu0 0.0
        %865 = vmatpush1.xpose.msra.mxu0 0.0
        %866 = vmatprep.subr.mxu0 0.0
        %867 = vmatpush1.xpose.msra.mxu0 0.0
        %868 = vmatprep.subr.mxu0 0.0
        %869 = vmatpush1.xpose.msra.mxu0 0.0
        %870 = vmatprep.subr.mxu0 0.0
        %871 = vmatpush1.xpose.msra.mxu0 0.0
        %872 = vmatprep.subr.mxu0 0.0
        %873 = vmatpush1.xpose.msra.mxu0 0.0
        %874 = vmatprep.subr.mxu0 0.0
        %875 = vmatpush1.xpose.msra.mxu0 0.0
        %876 = vmatprep.subr.mxu0 0.0
        %877 = vmatpush1.xpose.msra.mxu0 0.0
        %878 = vmatprep.subr.mxu0 0.0
        %879 = vmatpush1.xpose.msra.mxu0 %v860
        %880 = vmatprep.subr.mxu0 0.0
        %881 = vmatpush1.xpose.msra.mxu0 %v857
        %882 = vmatprep.subr.mxu0 0.0
        %883 = vmatpush1.xpose.msra.mxu0 %v854
        %884 = vmatprep.subr.mxu0 0.0
        %885 = vmatpush1.xpose.msra.mxu0 %v851
        %886 = vmatprep.subr.mxu0 0.0
        %887 = vmatpush1.xpose.msra.mxu0 %v848
        %888 = vmatprep.subr.mxu0 0.0
        %889 = vmatpush1.xpose.msra.mxu0 %v845
        %890 = vmatprep.subr.mxu0 0.0
        %891 = vmatpush1.xpose.msra.mxu0 %v842
        %892 = vmatprep.subr.mxu0 0.0
        %893 = vmatpush1.xpose.msra.mxu0 %v839
        %894 = vmatprep.subr.mxu0 0.0
        %895 = vmatpush2.xpose.msra.mxu0 0.0
        %896 = vmatprep.subr.mxu0 0.0
        %897 = vmatpush2.xpose.msra.mxu0 0.0
        %898 = vmatprep.subr.mxu0 0.0
        %899 = vmatpush2.xpose.msra.mxu0 0.0
        %900 = vmatprep.subr.mxu0 0.0
        %901 = vmatpush2.xpose.msra.mxu0 0.0
        %902 = vmatprep.subr.mxu0 0.0
        %903 = vmatpush2.xpose.msra.mxu0 0.0
        %904 = vmatprep.subr.mxu0 0.0
        %905 = vmatpush2.xpose.msra.mxu0 0.0
        %906 = vmatprep.subr.mxu0 0.0
        %907 = vmatpush2.xpose.msra.mxu0 0.0
        %908 = vmatprep.subr.mxu0 0.0
        %909 = vmatpush2.xpose.msra.mxu0 0.0
        %910 = vmatprep.subr.mxu0 0.0
        %911 = vmatpush2.xpose.msra.mxu0 0.0
        %912 = vmatprep.subr.mxu0 0.0
        %913 = vmatpush2.xpose.msra.mxu0 0.0
        %914 = vmatprep.subr.mxu0 0.0
        %915 = vmatpush2.xpose.msra.mxu0 0.0
        %916 = vmatprep.subr.mxu0 0.0
        %917 = vmatpush2.xpose.msra.mxu0 0.0
        %918 = vmatprep.subr.mxu0 0.0
        %919 = vmatpush2.xpose.msra.mxu0 0.0
        %920 = vmatprep.subr.mxu0 0.0
        %921 = vmatpush2.xpose.msra.mxu0 0.0
        %922 = vmatprep.subr.mxu0 0.0
        %923 = vmatpush2.xpose.msra.mxu0 0.0
        %924 = vmatprep.subr.mxu0 0.0
        %925 = vmatpush2.xpose.msra.mxu0 0.0
        %926 = vmatprep.mubr.f32.mxu0 0.0
        %927 = vmatmul.mubr.f32.gmra.mxu0 %v836
        %v928 = vpop.f32.mrf.mxu0
        %v929 = vadd.f32 0.0, %v928
        %v930 = vpop.f32.mrf.mxu0
        %931 = vdwg.mxu0
        %v932 = vadd.f32 %v823, %v929
        %s933 = scalar_lea.vmem %s1, 28
        %v934 = vld [vmem:[%s933] sm:$0xf]
        %935 = vrot.lane.b32.xlu0 %v825, 124
        %v936 = vpop.permute.xlu0 %935
        %937 = vrot.lane.b32.xlu0 %v826, 124
        %v938 = vpop.permute.xlu0 %937
        %939 = vrot.lane.b32.xlu0 %v827, 124
        %v940 = vpop.permute.xlu0 %939
        %941 = vrot.lane.b32.xlu0 %v828, 124
        %v942 = vpop.permute.xlu0 %941
        %943 = vrot.lane.b32.xlu0 %v829, 124
        %v944 = vpop.permute.xlu0 %943
        %945 = vrot.lane.b32.xlu0 %v830, 124
        %v946 = vpop.permute.xlu0 %945
        %947 = vrot.lane.b32.xlu0 %v831, 124
        %v948 = vpop.permute.xlu0 %947
        %949 = vrot.lane.b32.xlu0 %v832, 124
        %v950 = vpop.permute.xlu0 %949
        %v952 = vsel %vm184, %v934, 0
        %v954 = vsel %vm184, %v936, 0
        %v956 = vsel %vm184, %v938, 0
        %v958 = vsel %vm184, %v940, 0
        %v960 = vsel %vm184, %v942, 0
        %v962 = vsel %vm184, %v944, 0
        %v964 = vsel %vm184, %v946, 0
        %v966 = vsel %vm184, %v948, 0
        %v968 = vsel %vm184, %v950, 0
        %970 = vmatprep.subr.mxu0 0.0
        %971 = vmatpush1.xpose.msra.mxu0 0.0
        %972 = vmatprep.subr.mxu0 0.0
        %973 = vmatpush1.xpose.msra.mxu0 0.0
        %974 = vmatprep.subr.mxu0 0.0
        %975 = vmatpush1.xpose.msra.mxu0 0.0
        %976 = vmatprep.subr.mxu0 0.0
        %977 = vmatpush1.xpose.msra.mxu0 0.0
        %978 = vmatprep.subr.mxu0 0.0
        %979 = vmatpush1.xpose.msra.mxu0 0.0
        %980 = vmatprep.subr.mxu0 0.0
        %981 = vmatpush1.xpose.msra.mxu0 0.0
        %982 = vmatprep.subr.mxu0 0.0
        %983 = vmatpush1.xpose.msra.mxu0 0.0
        %984 = vmatprep.subr.mxu0 0.0
        %985 = vmatpush1.xpose.msra.mxu0 0.0
        %986 = vmatprep.subr.mxu0 0.0
        %987 = vmatpush1.xpose.msra.mxu0 %v968
        %988 = vmatprep.subr.mxu0 0.0
        %989 = vmatpush1.xpose.msra.mxu0 %v966
        %990 = vmatprep.subr.mxu0 0.0
        %991 = vmatpush1.xpose.msra.mxu0 %v964
        %992 = vmatprep.subr.mxu0 0.0
        %993 = vmatpush1.xpose.msra.mxu0 %v962
        %994 = vmatprep.subr.mxu0 0.0
        %995 = vmatpush1.xpose.msra.mxu0 %v960
        %996 = vmatprep.subr.mxu0 0.0
        %997 = vmatpush1.xpose.msra.mxu0 %v958
        %998 = vmatprep.subr.mxu0 0.0
        %999 = vmatpush1.xpose.msra.mxu0 %v956
        %1000 = vmatprep.subr.mxu0 0.0
        %1001 = vmatpush1.xpose.msra.mxu0 %v954
        %1002 = vmatprep.subr.mxu0 0.0
        %1003 = vmatpush2.xpose.msra.mxu0 0.0
        %1004 = vmatprep.subr.mxu0 0.0
        %1005 = vmatpush2.xpose.msra.mxu0 0.0
        %1006 = vmatprep.subr.mxu0 0.0
        %1007 = vmatpush2.xpose.msra.mxu0 0.0
        %1008 = vmatprep.subr.mxu0 0.0
        %1009 = vmatpush2.xpose.msra.mxu0 0.0
        %1010 = vmatprep.subr.mxu0 0.0
        %1011 = vmatpush2.xpose.msra.mxu0 0.0
        %1012 = vmatprep.subr.mxu0 0.0
        %1013 = vmatpush2.xpose.msra.mxu0 0.0
        %1014 = vmatprep.subr.mxu0 0.0
        %1015 = vmatpush2.xpose.msra.mxu0 0.0
        %1016 = vmatprep.subr.mxu0 0.0
        %1017 = vmatpush2.xpose.msra.mxu0 0.0
        %1018 = vmatprep.subr.mxu0 0.0
        %1019 = vmatpush2.xpose.msra.mxu0 0.0
        %1020 = vmatprep.subr.mxu0 0.0
        %1021 = vmatpush2.xpose.msra.mxu0 0.0
        %1022 = vmatprep.subr.mxu0 0.0
        %1023 = vmatpush2.xpose.msra.mxu0 0.0
        %1024 = vmatprep.subr.mxu0 0.0
        %1025 = vmatpush2.xpose.msra.mxu0 0.0
        %1026 = vmatprep.subr.mxu0 0.0
        %1027 = vmatpush2.xpose.msra.mxu0 0.0
        %1028 = vmatprep.subr.mxu0 0.0
        %1029 = vmatpush2.xpose.msra.mxu0 0.0
        %1030 = vmatprep.subr.mxu0 0.0
        %1031 = vmatpush2.xpose.msra.mxu0 0.0
        %1032 = vmatprep.subr.mxu0 0.0
        %1033 = vmatpush2.xpose.msra.mxu0 0.0
        %1034 = vmatprep.mubr.f32.mxu0 0.0
        %1035 = vmatmul.mubr.f32.gmra.mxu0 %v952
        %v1036 = vpop.f32.mrf.mxu0
        %v1037 = vadd.f32 0.0, %v1036
        %v1038 = vpop.f32.mrf.mxu0
        %1039 = vdwg.mxu0
        %v1040 = vadd.f32 %v932, %v1037
        %v1041 = vld [vmem:[%s824 + $0x1] sm:$0xff]
        %v1042 = vld [vmem:[%s824 + $0x21] sm:$0xff]
        %v1043 = vld [vmem:[%s824 + $0x41] sm:$0xff]
        %v1044 = vld [vmem:[%s824 + $0x61] sm:$0xff]
        %v1045 = vld [vmem:[%s824 + $0x81] sm:$0xff]
        %v1046 = vld [vmem:[%s824 + $0xa1] sm:$0xff]
        %v1047 = vld [vmem:[%s824 + $0xc1] sm:$0xff]
        %v1048 = vld [vmem:[%s824 + $0xe1] sm:$0xff]
        %s1049 = scalar_lea.vmem %s1, 32
        %v1050 = vld [vmem:[%s1049] sm:$0xf]
        %v1052 = vsel %vm184, %v1050, 0
        %v1055 = vsel %vm184, %v1041, 0
        %v1058 = vsel %vm184, %v1042, 0
        %v1061 = vsel %vm184, %v1043, 0
        %v1064 = vsel %vm184, %v1044, 0
        %v1067 = vsel %vm184, %v1045, 0
        %v1070 = vsel %vm184, %v1046, 0
        %v1073 = vsel %vm184, %v1047, 0
        %v1076 = vsel %vm184, %v1048, 0
        %1078 = vmatprep.subr.mxu0 0.0
        %1079 = vmatpush1.xpose.msra.mxu0 0.0
        %1080 = vmatprep.subr.mxu0 0.0
        %1081 = vmatpush1.xpose.msra.mxu0 0.0
        %1082 = vmatprep.subr.mxu0 0.0
        %1083 = vmatpush1.xpose.msra.mxu0 0.0
        %1084 = vmatprep.subr.mxu0 0.0
        %1085 = vmatpush1.xpose.msra.mxu0 0.0
        %1086 = vmatprep.subr.mxu0 0.0
        %1087 = vmatpush1.xpose.msra.mxu0 0.0
        %1088 = vmatprep.subr.mxu0 0.0
        %1089 = vmatpush1.xpose.msra.mxu0 0.0
        %1090 = vmatprep.subr.mxu0 0.0
        %1091 = vmatpush1.xpose.msra.mxu0 0.0
        %1092 = vmatprep.subr.mxu0 0.0
        %1093 = vmatpush1.xpose.msra.mxu0 0.0
        %1094 = vmatprep.subr.mxu0 0.0
        %1095 = vmatpush1.xpose.msra.mxu0 %v1076
        %1096 = vmatprep.subr.mxu0 0.0
        %1097 = vmatpush1.xpose.msra.mxu0 %v1073
        %1098 = vmatprep.subr.mxu0 0.0
        %1099 = vmatpush1.xpose.msra.mxu0 %v1070
        %1100 = vmatprep.subr.mxu0 0.0
        %1101 = vmatpush1.xpose.msra.mxu0 %v1067
        %1102 = vmatprep.subr.mxu0 0.0
        %1103 = vmatpush1.xpose.msra.mxu0 %v1064
        %1104 = vmatprep.subr.mxu0 0.0
        %1105 = vmatpush1.xpose.msra.mxu0 %v1061
        %1106 = vmatprep.subr.mxu0 0.0
        %1107 = vmatpush1.xpose.msra.mxu0 %v1058
        %1108 = vmatprep.subr.mxu0 0.0
        %1109 = vmatpush1.xpose.msra.mxu0 %v1055
        %1110 = vmatprep.subr.mxu0 0.0
        %1111 = vmatpush2.xpose.msra.mxu0 0.0
        %1112 = vmatprep.subr.mxu0 0.0
        %1113 = vmatpush2.xpose.msra.mxu0 0.0
        %1114 = vmatprep.subr.mxu0 0.0
        %1115 = vmatpush2.xpose.msra.mxu0 0.0
        %1116 = vmatprep.subr.mxu0 0.0
        %1117 = vmatpush2.xpose.msra.mxu0 0.0
        %1118 = vmatprep.subr.mxu0 0.0
        %1119 = vmatpush2.xpose.msra.mxu0 0.0
        %1120 = vmatprep.subr.mxu0 0.0
        %1121 = vmatpush2.xpose.msra.mxu0 0.0
        %1122 = vmatprep.subr.mxu0 0.0
        %1123 = vmatpush2.xpose.msra.mxu0 0.0
        %1124 = vmatprep.subr.mxu0 0.0
        %1125 = vmatpush2.xpose.msra.mxu0 0.0
        %1126 = vmatprep.subr.mxu0 0.0
        %1127 = vmatpush2.xpose.msra.mxu0 0.0
        %1128 = vmatprep.subr.mxu0 0.0
        %1129 = vmatpush2.xpose.msra.mxu0 0.0
        %1130 = vmatprep.subr.mxu0 0.0
        %1131 = vmatpush2.xpose.msra.mxu0 0.0
        %1132 = vmatprep.subr.mxu0 0.0
        %1133 = vmatpush2.xpose.msra.mxu0 0.0
        %1134 = vmatprep.subr.mxu0 0.0
        %1135 = vmatpush2.xpose.msra.mxu0 0.0
        %1136 = vmatprep.subr.mxu0 0.0
        %1137 = vmatpush2.xpose.msra.mxu0 0.0
        %1138 = vmatprep.subr.mxu0 0.0
        %1139 = vmatpush2.xpose.msra.mxu0 0.0
        %1140 = vmatprep.subr.mxu0 0.0
        %1141 = vmatpush2.xpose.msra.mxu0 0.0
        %1142 = vmatprep.mubr.f32.mxu0 0.0
        %1143 = vmatmul.mubr.f32.gmra.mxu0 %v1052
        %v1144 = vpop.f32.mrf.mxu0
        %v1145 = vadd.f32 0.0, %v1144
        %v1146 = vpop.f32.mrf.mxu0
        %1147 = vdwg.mxu0
        %v1148 = vadd.f32 %v1040, %v1145
        %vm1149 = vcmask 519168
        %1150 = vst.msk [vmem:[%s163] sm:$0xf] %vm1149, %v1148
        %s1151 = sand.u32 %s93, 1
        %s1152 = scalar_lea.sflag [#allocation3], %s1151
        %s1153 = sand.u32 %s93, 1
        %s1154 = smul.addr %s1153, 4
        %s1155 = scalar_lea.vmem [#allocation2], %s1154
        // Predicated region
        $region33: #{tpu_custom_call.1} parent=31 // pred_check
          %p1156 = pneg %p103
        $region34: #{tpu_custom_call.1} parent=31 // pred_check_branch
          %1158 = sbr.rel (%p1156) target = $region36
        $region35: #{tpu_custom_call.1} parent=31 // pred_region
          %s1160 = ssub.s32 64, 64
          %1161 = vsyncadd %s1152, %s1160
          %s1162 = smul.addr %s17, 64
          %s1163 = scalar_lea.hbm %s3, %s1162
          %s1165 = sshll.u32 %s1155, 4
          %s1166 = int_to_ptr.vmem [resolvable:$true] %s1165
          %1168 = dma.vmem_to_hbm [thread:$0]  %s1166, 64, %s1163, %s1152
        $region36: #{tpu_custom_call.1} parent=31 // pred_fallthru
          _
      $region32: #{tpu_custom_call.1} parent=5 // pred_fallthru
        _
      %p1169 = scmp.le.s32.totalorder 2, %s12
      // Predicated region
      $region37: #{tpu_custom_call.1} parent=5 // pred_check
        %p1170 = pneg %p1169
      $region38: #{tpu_custom_call.1} parent=5 // pred_check_branch
        %1172 = sbr.rel (%p1170) target = $region40
      $region39: #{tpu_custom_call.1} parent=5 // pred_region
        %s1173 = ssub.s32 %s12, 2
        // Predicated region
        $region41: #{tpu_custom_call.1} parent=39 // pred_check
          %p1174 = pneg %p109
        $region42: #{tpu_custom_call.1} parent=39 // pred_check_branch
          %1176 = sbr.rel (%p1174) target = $region44
        $region43: #{tpu_custom_call.1} parent=39 // pred_region
          %s1177 = sand.u32 %s94, 1
          %s1178 = scalar_lea.sflag [#allocation3], %s1177
          %s1179 = sand.u32 %s94, 1
          %s1180 = smul.addr %s1179, 4
          %s1181 = scalar_lea.vmem [#allocation2], %s1180
          %1182 = dma.done %s1178, 64
        $region44: #{tpu_custom_call.1} parent=39 // pred_fallthru
          _
      $region40: #{tpu_custom_call.1} parent=5 // pred_fallthru
        _
    $region6: #{tpu_custom_call.1} parent=1 // loop_footer
      %s16 = sadd.s32 1, %s12
    $region7: #{tpu_custom_call.1} parent=1 // loop_footer_branch
      %11 = sbr.rel target = $region3
    $region8: #{tpu_custom_call.1} parent=1 // loop_exit
      _
    %1183 = vsyncpa [#allocation3], 1
    %s1184 = scalar_lea.sflag [#allocation3], 1
    %1185 = vsyncpa %s1184, 1

</llo_original>
